<compile_context>
chip_gen: v5e
topology: v5e:2x2
jax: 0.10.0
libtpu: 0.0.40
codegen_flags: <defaults>
</compile_context>

<pallas_src>
import jax
import jax.numpy as jnp
import numpy as np
from jax.experimental import pallas as pl
from jax.experimental.pallas import tpu as pltpu

LANE = 128
SUBLANE = 8


def _round_up(x, m):
    return ((x + m - 1) // m) * m


def qnetwork_kernel(obs_ref, w1_ref, b1_ref, w2_ref, b2_ref, out_ref):
    """Fused Linear -> ReLU -> Linear on one batch tile.

    obs_ref: (TB, D_in)     w1_ref: (D_in, H_pad)   b1_ref: (1, H_pad)
    w2_ref:  (H_pad, A)     b2_ref: (1, A)          out_ref: (TB, A)
    """
    x = obs_ref[...]
    # First matmul; accumulate, bias add and ReLU in f32.
    h = jnp.dot(x, w1_ref[...], preferred_element_type=jnp.float32) + b1_ref[...]
    h = jnp.maximum(h, 0.0)
    # Second matmul directly against the UNPADDED action columns -> narrow,
    # exact output; no lane-padded writeback to HBM.
    q = jnp.dot(h.astype(w2_ref.dtype), w2_ref[...],
                preferred_element_type=jnp.float32) + b2_ref[...]
    out_ref[...] = q.astype(out_ref.dtype)


def init_qnetwork_params(key, obs_size, action_size, hidden_size=100):
    """Deterministic synthetic init (shapes mirror the nn.Linear layers)."""
    d_in = int(np.prod(obs_size))
    k1, k2, k3, k4 = jax.random.split(key, 4)
    # Stored as (in, out); equivalent to torch's x @ W.T with W of shape (out, in).
    w1 = jax.random.normal(k1, (d_in, hidden_size), jnp.float32) * (1.0 / np.sqrt(d_in))
    b1 = jax.random.normal(k2, (hidden_size,), jnp.float32) * 0.01
    w2 = jax.random.normal(k3, (hidden_size, action_size), jnp.float32) * (1.0 / np.sqrt(hidden_size))
    b2 = jax.random.normal(k4, (action_size,), jnp.float32) * 0.01
    return w1, b1, w2, b2


def pad_qnetwork_params(w1, b1, w2, b2, compute_dtype=jnp.float32):
    """Pad hidden dim to lane width 128 ONCE (hoisted out of the forward pass).

    Zero-padding is exact: padded hidden units get bias 0 -> ReLU(0) = 0 and
    multiply zero rows of w2, contributing nothing.  The action dim is left
    unpadded so the kernel writes exactly (batch, action) f32 to HBM.
    """
    d_in, hidden = w1.shape
    action = w2.shape[1]
    h_pad = _round_up(hidden, LANE)
    w1_p = jnp.zeros((d_in, h_pad), compute_dtype).at[:, :hidden].set(
        w1.astype(compute_dtype))
    b1_p = jnp.zeros((1, h_pad), jnp.float32).at[:, :hidden].set(
        b1.reshape(1, -1).astype(jnp.float32))
    w2_p = jnp.zeros((h_pad, action), compute_dtype).at[:hidden, :].set(
        w2.astype(compute_dtype))
    b2_p = b2.reshape(1, -1).astype(jnp.float32)
    return w1_p, b1_p, w2_p, b2_p


def qnetwork_forward(obs, w1_p, b1_p, w2_p, b2_p, *, batch_tile=512):
    """obs: (batch, *obs_size). Params must come from pad_qnetwork_params.
    Returns q-values (batch, action_size), float32."""
    batch = obs.shape[0]
    obs_flat = obs.reshape(batch, -1)            # like torch .view(B, -1)
    d_in = obs_flat.shape[1]
    h_pad = w1_p.shape[1]
    action = w2_p.shape[1]
    obs_flat = obs_flat.astype(w1_p.dtype)       # bf16 operands if requested

    out_shape = jax.ShapeDtypeStruct((batch, action), jnp.float32)

    if batch <= batch_tile:
        # --- Small-batch path: single fused block, no grid, no pipelining. ---
        vmem = pltpu.MemorySpace.VMEM
        return pl.pallas_call(
            qnetwork_kernel,
            out_shape=out_shape,
            in_specs=[pl.BlockSpec(memory_space=vmem)] * 5,
            out_specs=pl.BlockSpec(memory_space=vmem),
        )(obs_flat, w1_p, b1_p, w2_p, b2_p)

    # --- Large-batch path: 1-D software-pipelined grid over batch only. ---
    # Guarantee >= 2 tiles so the "parallel" axis uses both v7x TensorCores;
    # keep the tile a multiple of 8 (sublane).
    batch_tile = min(batch_tile, _round_up(pl.cdiv(batch, 2), SUBLANE))
    n_tiles = pl.cdiv(batch, batch_tile)         # ragged last tile is clipped

    itemsize = jnp.dtype(w1_p.dtype).itemsize
    flops = 2 * batch * (d_in * h_pad + h_pad * action)
    bytes_accessed = (itemsize * (obs_flat.size + w1_p.size + w2_p.size)
                      + 4 * (b1_p.size + b2_p.size + batch * action))

    return pl.pallas_call(
        qnetwork_kernel,
        out_shape=out_shape,
        grid_spec=pltpu.PrefetchScalarGridSpec(
            num_scalar_prefetch=0,
            grid=(n_tiles,),
            in_specs=[
                pl.BlockSpec((batch_tile, d_in), lambda i: (i, 0)),   # obs: tiled over batch
                pl.BlockSpec((d_in, h_pad), lambda i: (0, 0)),        # w1: VMEM-resident
                pl.BlockSpec((1, h_pad), lambda i: (0, 0)),           # b1: VMEM-resident
                pl.BlockSpec((h_pad, action), lambda i: (0, 0)),      # w2: VMEM-resident
                pl.BlockSpec((1, action), lambda i: (0, 0)),          # b2: VMEM-resident
            ],
            out_specs=pl.BlockSpec((batch_tile, action), lambda i: (i, 0)),
        ),
        compiler_params=pltpu.CompilerParams(
            dimension_semantics=("parallel",),   # independent rows -> megacore on v7x
        ),
        cost_estimate=pl.CostEstimate(
            flops=flops, transcendentals=0, bytes_accessed=bytes_accessed),
    )(obs_flat, w1_p, b1_p, w2_p, b2_p)


def _reference(obs, w1, b1, w2, b2):
    obs_flat = obs.reshape(obs.shape[0], -1)
    return jnp.maximum(obs_flat @ w1 + b1, 0.0) @ w2 + b2


if __name__ == "__main__":
    key = jax.random.PRNGKey(0)
    kx, kp, kx2 = jax.random.split(key, 3)

    # Small shapes consistent with the module: obs (4, 4) flattened to 16 features.
    batch = 2
    obs_size = (4, 4)
    action_size = 4
    hidden_size = 32

    obs = jax.random.normal(kx, (batch,) + obs_size, jnp.float32)
    w1, b1, w2, b2 = init_qnetwork_params(kp, obs_size, action_size, hidden_size)
    params_p = pad_qnetwork_params(w1, b1, w2, b2)   # pad once, reuse every call

    # Path 1: small batch -> gridless fused block.
    q = qnetwork_forward(obs, *params_p)
    jax.block_until_ready(q)
    np.testing.assert_allclose(
        np.asarray(q), np.asarray(_reference(obs, w1, b1, w2, b2)),
        rtol=1e-5, atol=1e-5)

    # Path 2: exercise the batch-tiled grid path (including a ragged last tile)
    # at small scale by forcing batch_tile=8.
    obs_big = jax.random.normal(kx2, (13,) + obs_size, jnp.float32)
    q_big = qnetwork_forward(obs_big, *params_p, batch_tile=8)
    jax.block_until_ready(q_big)
    np.testing.assert_allclose(
        np.asarray(q_big), np.asarray(_reference(obs_big, w1, b1, w2, b2)),
        rtol=1e-5, atol=1e-5)

    print("KERNEL_OK")
</pallas_src>

<mosaic_0001>
module attributes {stable_mosaic.version = 11 : i64} {
  func.func @qnetwork_kernel(%arg0: memref<2x16xf32, #tpu.memory_space<vmem>>, %arg1: memref<16x128xf32, #tpu.memory_space<vmem>>, %arg2: memref<1x128xf32, #tpu.memory_space<vmem>>, %arg3: memref<128x4xf32, #tpu.memory_space<vmem>>, %arg4: memref<1x4xf32, #tpu.memory_space<vmem>>, %arg5: memref<2x4xf32, #tpu.memory_space<vmem>>) attributes {dimension_semantics = [], scalar_prefetch = 0 : i64, scratch_operands = 0 : i64, tpu.core_type = #tpu.core_type<tc>} {
    %c0 = arith.constant 0 : index
    %c0_0 = arith.constant 0 : index
    %0 = vector.load %arg0[%c0, %c0_0] : memref<2x16xf32, #tpu.memory_space<vmem>>, vector<2x16xf32>
    %c0_1 = arith.constant 0 : index
    %c0_2 = arith.constant 0 : index
    %1 = vector.load %arg1[%c0_1, %c0_2] : memref<16x128xf32, #tpu.memory_space<vmem>>, vector<16x128xf32>
    %cst = arith.constant dense<0.000000e+00> : vector<2x128xf32>
    %2 = tpu.matmul %0, %1, %cst {dimension_numbers = #tpu.dot_dimension_numbers<[1], [0], [0], [1], [0, 0, 1, 1], [], []>} : vector<2x16xf32>, vector<16x128xf32>, vector<2x128xf32> -> vector<2x128xf32>
    %c0_3 = arith.constant 0 : index
    %c0_4 = arith.constant 0 : index
    %3 = vector.load %arg2[%c0_3, %c0_4] : memref<1x128xf32, #tpu.memory_space<vmem>>, vector<1x128xf32>
    %4 = vector.broadcast %3 : vector<1x128xf32> to vector<2x128xf32>
    %5 = arith.addf %2, %4 : vector<2x128xf32>
    %cst_5 = arith.constant 0.000000e+00 : f32
    %6 = vector.broadcast %cst_5 : f32 to vector<2x128xf32>
    %7 = arith.maximumf %5, %6 : vector<2x128xf32>
    %c0_6 = arith.constant 0 : index
    %c0_7 = arith.constant 0 : index
    %8 = vector.load %arg3[%c0_6, %c0_7] : memref<128x4xf32, #tpu.memory_space<vmem>>, vector<128x4xf32>
    %cst_8 = arith.constant dense<0.000000e+00> : vector<2x4xf32>
    %9 = tpu.matmul %7, %8, %cst_8 {dimension_numbers = #tpu.dot_dimension_numbers<[1], [0], [0], [1], [0, 0, 1, 1], [], []>} : vector<2x128xf32>, vector<128x4xf32>, vector<2x4xf32> -> vector<2x4xf32>
    %c0_9 = arith.constant 0 : index
    %c0_10 = arith.constant 0 : index
    %10 = vector.load %arg4[%c0_9, %c0_10] : memref<1x4xf32, #tpu.memory_space<vmem>>, vector<1x4xf32>
    %11 = vector.broadcast %10 : vector<1x4xf32> to vector<2x4xf32>
    %12 = arith.addf %9, %11 : vector<2x4xf32>
    %c0_11 = arith.constant 0 : index
    %c0_12 = arith.constant 0 : index
    %13 = vector.load %arg5[%c0_11, %c0_12] : memref<2x4xf32, #tpu.memory_space<vmem>>, vector<2x4xf32>
    tpu.vector_store %arg5[%c0_11, %c0_12], %12 {strides = array<i32>} : memref<2x4xf32, #tpu.memory_space<vmem>>, vector<2x4xf32>,
    return
  }
}

</mosaic_0001>

<llo_original>
// kernel: tpu_custom_call.1
$region0: #{tpu_custom_call.1}
  #allocation0 [shape = 'u32[]', space=smem, size = 0x4, offset = 0x4, fixed_abs, tag = 'smem constant byte address 0x4 - core index']
  #allocation1 [shape = 'u32[72,128]{1,0:T(1,128)}', space=vmem, size = 0x9000, scoped, tag = 'internal scratch']
  %s0 = inlined_call_operand.vmem [shape: f32[2,16], index: 0, kind: input, shape index: {}]
  %s1 = inlined_call_operand.vmem [shape: f32[16,128], index: 1, kind: input, shape index: {}]
  %s2 = inlined_call_operand.vmem [shape: f32[1,128], index: 2, kind: input, shape index: {}]
  %s3 = inlined_call_operand.vmem [shape: f32[128,4], index: 3, kind: input, shape index: {}]
  %s4 = inlined_call_operand.vmem [shape: f32[1,4], index: 4, kind: input, shape index: {}]
  %s5 = inlined_call_operand.hbm [shape: f32[2,4], index: 5, kind: output, shape index: {}]
  %s6 = sld [smem:[#allocation0]]
  $region30: #{tpu_custom_call.1} parent=0
    _
  %s8 = ssub.s32 1, %s6
  %s9 = scalar_select 0, %s8, %s6
  $region1: #{tpu_custom_call.1} parent=0
    #allocation2 [shape = 'u8[1024]{0}', space=vmem, size = 0x400, scoped, tag = 'output window, operand 0, single buffered']
    #allocation3 [shape = 's32[1]{0}', space=sflag, size = 0x4, scoped, tag = 'scoped memory for tpu_custom_call.1']
    %10 = vsyncpa [#allocation3], 0
    // Predicated region
    $region2: #{tpu_custom_call.1} parent=1 // pred_check
      _
    $region3: #{tpu_custom_call.1} parent=1 // pred_check_branch
      %12 = sbr.rel (0) target = $region5
    $region4: #{tpu_custom_call.1} parent=1 // pred_region
      _
    $region5: #{tpu_custom_call.1} parent=1 // pred_fallthru
      _
    // Predicated region
    $region6: #{tpu_custom_call.1} parent=1 // pred_check
      _
    $region7: #{tpu_custom_call.1} parent=1 // pred_check_branch
      %14 = sbr.rel (0) target = $region9
    $region8: #{tpu_custom_call.1} parent=1 // pred_region
      _
    $region9: #{tpu_custom_call.1} parent=1 // pred_fallthru
      _
    // Predicated region
    $region10: #{tpu_custom_call.1} parent=1 // pred_check
      _
    $region11: #{tpu_custom_call.1} parent=1 // pred_check_branch
      %16 = sbr.rel (0) target = $region13
    $region12: #{tpu_custom_call.1} parent=1 // pred_region
      _
    $region13: #{tpu_custom_call.1} parent=1 // pred_fallthru
      _
    // Predicated region
    $region14: #{tpu_custom_call.1} parent=1 // pred_check
      _
    $region15: #{tpu_custom_call.1} parent=1 // pred_check_branch
      %18 = sbr.rel (0) target = $region17
    $region16: #{tpu_custom_call.1} parent=1 // pred_region
      _
    $region17: #{tpu_custom_call.1} parent=1 // pred_fallthru
      _
    // Predicated region
    $region18: #{tpu_custom_call.1} parent=1 // pred_check
      _
    $region19: #{tpu_custom_call.1} parent=1 // pred_check_branch
      %20 = sbr.rel (0) target = $region21
    $region20: #{tpu_custom_call.1} parent=1 // pred_region
      _
    $region21: #{tpu_custom_call.1} parent=1 // pred_fallthru
      _
    %v21 = vld [vmem:[%s0] sm:$0x3]
    %v22 = vld [vmem:[%s1] sm:$0xff]
    %v23 = vld [vmem:[%s1 + $0x8] sm:$0xff]
    %v24 = vld [vmem:[%s2] sm:$0x1]
    %v26 = vperm.slane %v24, 0
    %vm28 = vcmask 130048
    %v30 = vsel %vm28, %v21, 0
    %32 = vmatpush.msra.mxu0 0.0
    %33 = vmatpush.msra.mxu0 0.0
    %34 = vmatpush.msra.mxu0 0.0
    %35 = vmatpush.msra.mxu0 0.0
    %36 = vmatpush.msra.mxu0 0.0
    %37 = vmatpush.msra.mxu0 0.0
    %38 = vmatpush.msra.mxu0 0.0
    %39 = vmatpush.msra.mxu0 0.0
    %40 = vmatpush.msra.mxu0 0.0
    %41 = vmatpush.msra.mxu0 0.0
    %42 = vmatpush.msra.mxu0 0.0
    %43 = vmatpush.msra.mxu0 0.0
    %44 = vmatpush.msra.mxu0 0.0
    %45 = vmatpush.msra.mxu0 0.0
    %46 = vmatpush.msra.mxu0 %v23
    %47 = vmatpush.msra.mxu0 %v22
    %48 = vmatmul.f32.gmra.mxu0 %v30
    %v49 = vpop.f32.mrf.mxu0
    %v50 = vadd.f32 %v26, %v49
    %51 = vdwg.mxu0
    %v52 = vmax.f32 %v50, 0.0
    %v53 = vld [vmem:[%s3] sm:$0xff]
    %v54 = vld [vmem:[%s3 + $0x8] sm:$0xff]
    %v55 = vld [vmem:[%s3 + $0x10] sm:$0xff]
    %v56 = vld [vmem:[%s3 + $0x18] sm:$0xff]
    %v57 = vld [vmem:[%s3 + $0x20] sm:$0xff]
    %v58 = vld [vmem:[%s3 + $0x28] sm:$0xff]
    %v59 = vld [vmem:[%s3 + $0x30] sm:$0xff]
    %v60 = vld [vmem:[%s3 + $0x38] sm:$0xff]
    %v61 = vld [vmem:[%s3 + $0x40] sm:$0xff]
    %v62 = vld [vmem:[%s3 + $0x48] sm:$0xff]
    %v63 = vld [vmem:[%s3 + $0x50] sm:$0xff]
    %v64 = vld [vmem:[%s3 + $0x58] sm:$0xff]
    %v65 = vld [vmem:[%s3 + $0x60] sm:$0xff]
    %v66 = vld [vmem:[%s3 + $0x68] sm:$0xff]
    %v67 = vld [vmem:[%s3 + $0x70] sm:$0xff]
    %v68 = vld [vmem:[%s3 + $0x78] sm:$0xff]
    %v69 = vld [vmem:[%s4] sm:$0x1]
    %v71 = vperm.slane %v69, 0
    %73 = vmatpush.msra.mxu0 %v68
    %74 = vmatpush.msra.mxu0 %v67
    %75 = vmatpush.msra.mxu0 %v66
    %76 = vmatpush.msra.mxu0 %v65
    %77 = vmatpush.msra.mxu0 %v64
    %78 = vmatpush.msra.mxu0 %v63
    %79 = vmatpush.msra.mxu0 %v62
    %80 = vmatpush.msra.mxu0 %v61
    %81 = vmatpush.msra.mxu0 %v60
    %82 = vmatpush.msra.mxu0 %v59
    %83 = vmatpush.msra.mxu0 %v58
    %84 = vmatpush.msra.mxu0 %v57
    %85 = vmatpush.msra.mxu0 %v56
    %86 = vmatpush.msra.mxu0 %v55
    %87 = vmatpush.msra.mxu0 %v54
    %88 = vmatpush.msra.mxu0 %v53
    %89 = vmatmul.f32.gmra.mxu0 %v52
    %v90 = vpop.f32.mrf.mxu0
    %v91 = vadd.f32 %v71, %v90
    %92 = vdwg.mxu0
    %vm93 = vcmask 25600
    %94 = vst.msk [vmem:[#allocation2] sm:$0x3] %vm93, %v91
    // Predicated region
    $region22: #{tpu_custom_call.1} parent=1 // pred_check
      _
    $region23: #{tpu_custom_call.1} parent=1 // pred_check_branch
      %96 = sbr.rel (0) target = $region25
    $region24: #{tpu_custom_call.1} parent=1 // pred_region
      %98 = vsyncadd [#allocation3], 0
      %s100 = sshll.u32 [#allocation2], 4
      %s101 = int_to_ptr.vmem [resolvable:$true] %s100
      %s102 = sshll.u32 %s5, 4
      %s103 = int_to_ptr.hbm [resolvable:$true] %s102
      %105 = dma.vmem_to_hbm [thread:$0]  %s101, 32, %s103, [#allocation3]
    $region25: #{tpu_custom_call.1} parent=1 // pred_fallthru
      _
    // Predicated region
    $region26: #{tpu_custom_call.1} parent=1 // pred_check
      _
    $region27: #{tpu_custom_call.1} parent=1 // pred_check_branch
      %107 = sbr.rel (0) target = $region29
    $region28: #{tpu_custom_call.1} parent=1 // pred_region
      %109 = dma.done [#allocation3], 32
    $region29: #{tpu_custom_call.1} parent=1 // pred_fallthru
      _
    %110 = vsyncpa [#allocation3], 1

</llo_original>
